<compile_context>
chip_gen: v7x
topology: tpu7x:2x2x1
jax: 0.10.0
libtpu: 0.0.40
codegen_flags: <defaults>
</compile_context>

<pallas_src>
import jax
import jax.numpy as jnp
from jax import lax
from jax.experimental import pallas as pl
from jax.experimental.pallas import tpu as pltpu

EPS = 1e-5          # nn.BatchNorm2d default eps
LANE = 128          # TPU lane width


def _round_up(v, m):
    return ((v + m - 1) // m) * m


def _cdiv(a, b):
    return -(-a // b)


def _resident_spec(block_shape):
    """BlockSpec for a grid-invariant operand; single-buffered if supported."""
    n = len(block_shape)

    def index_map(i):
        return (0,) * n

    if hasattr(pl, "Buffered"):
        try:
            return pl.BlockSpec(block_shape, index_map,
                                pipeline_mode=pl.Buffered(1))
        except TypeError:       # older JAX without pipeline_mode kwarg
            pass
    return pl.BlockSpec(block_shape, index_map)


def _conv_relu_stats_kernel(p_ref, w_ref, b_ref, y_ref, stats_ref):
    """Pass 1: y = relu(patches @ W + b); emit y and [sum(y), sum(y*y)].

    Padded M rows (all-zero patches) contribute exactly relu(bias) to the
    sums; that is subtracted analytically in the finalize, so no row mask
    (iota/compare/select) is spent here.
    """
    y = jnp.dot(p_ref[...], w_ref[...], preferred_element_type=jnp.float32)
    y = jnp.maximum(y + b_ref[...], 0.0)
    y_ref[...] = y.astype(y_ref.dtype)
    stats_ref[:, 0, :] = jnp.sum(y, axis=0, keepdims=True)
    stats_ref[:, 1, :] = jnp.sum(y * y, axis=0, keepdims=True)


def _affine_kernel(y_ref, scale_ref, shift_ref, o_ref):
    """Pass 2: out = scale * y + shift (BatchNorm folded into one affine)."""
    y = y_ref[...].astype(jnp.float32)
    o_ref[...] = (y * scale_ref[...] + shift_ref[...]).astype(o_ref.dtype)


def conv_block(x, w, b, gamma, beta, stride, *, tm=512,
               compute_dtype=jnp.bfloat16, y_dtype=jnp.bfloat16,
               out_dtype=jnp.float32):
    """x: (N,C,H,W); w: (OC,C,KH,KW); b/gamma/beta: (OC,) -> (N,OC,OH,OW)."""
    N, C, H, W = x.shape
    OC, _, KH, KW = w.shape
    OH = (H - KH) // stride + 1
    OW = (W - KW) // stride + 1
    M = N * OH * OW
    K = C * KH * KW

    # Lane-dense padding: 128 always; 256 when the dim is large enough that the
    # padding overhead is negligible (full 2x256 MXU width on v6e/v7x).
    OCP = _round_up(OC, 256) if OC >= 256 else _round_up(OC, LANE)
    KP = _round_up(K, 256) if K >= 1024 else _round_up(K, LANE)

    in_b = jnp.dtype(compute_dtype).itemsize
    y_b = jnp.dtype(y_dtype).itemsize
    out_b = jnp.dtype(out_dtype).itemsize

    # TM from a ~16 MiB pipelined working-set budget (fits v5e's 16 MiB and
    # v7x's 32 MiB default scoped VMEM with headroom).
    # TODO(synk): if the weight slab alone blows this budget (huge K*OC), add
    # an 'arbitrary' K grid axis with an f32 VMEM accumulator instead of
    # shrinking TM to the floor.
    budget = 16 << 20
    fixed_ws = 2 * KP * OCP * in_b + 8 * OCP * 4          # weights + bias rows
    row_ws = max(2 * KP * in_b + 2 * OCP * y_b,           # pass 1: patches + y
                 2 * OCP * y_b + 2 * OCP * out_b)         # pass 2: y + out
    tm_vmem = max(8, (budget - fixed_ws) // row_ws)
    TM = max(8, min(tm, _round_up(M, 8), (tm_vmem // 8) * 8))

    # v7x megacore: keep the "parallel" axis balanced across 2 TensorCores
    # (>= 2 tiles when there is enough work, and an even tile count).
    n_tiles = _cdiv(M, TM)
    if n_tiles == 1 and M > 8:
        TM = _round_up(_cdiv(M, 2), 8)
        n_tiles = _cdiv(M, TM)
    if n_tiles > 1 and n_tiles % 2 == 1:
        for cand in range(TM - 8, 7, -8):
            if _cdiv(M, cand) % 2 == 0:
                TM, n_tiles = cand, _cdiv(M, cand)
                break
    MP = n_tiles * TM

    vmem_est = fixed_ws + TM * row_ws
    try:
        phys = int(pltpu.get_tpu_info().vmem_capacity_bytes)
    except Exception:
        phys = 64 << 20                       # v7x per-TensorCore (smallest)
    vmem_limit = int(min(max(int(vmem_est * 1.5) + (2 << 20), 24 << 20),
                         (phys * 3) // 4))
    cparams = pltpu.CompilerParams(dimension_semantics=("parallel",),
                                   vmem_limit_bytes=vmem_limit)

    # --- glue: im2col slab built directly in bf16 (feature index =
    # c*KH*KW + kh*KW + kw, matching PyTorch's weight.reshape(OC, -1)) ---
    xc = x.astype(compute_dtype)
    cols = []
    for kh in range(KH):
        for kw in range(KW):
            cols.append(xc[:, :, kh:kh + stride * OH:stride,
                               kw:kw + stride * OW:stride])
    patches = jnp.stack(cols, axis=2)                  # (N, C, KH*KW, OH, OW)
    patches = patches.transpose(0, 3, 4, 1, 2).reshape(M, K)
    patches = jnp.pad(patches, ((0, MP - M), (0, KP - K)))

    w2 = jnp.pad(w.reshape(OC, K).T.astype(compute_dtype),
                 ((0, KP - K), (0, OCP - OC)))         # (KP, OCP)
    b_p = jnp.pad(b, (0, OCP - OC)).reshape(1, OCP).astype(jnp.float32)
    gamma_p = jnp.pad(gamma, (0, OCP - OC)).astype(jnp.float32)
    beta_p = jnp.pad(beta, (0, OCP - OC)).astype(jnp.float32)

    # --- pass 1: conv + ReLU, store y, emit per-tile partial batch stats ---
    y_flat, stats = pl.pallas_call(
        _conv_relu_stats_kernel,
        out_shape=(jax.ShapeDtypeStruct((MP, OCP), y_dtype),
                   jax.ShapeDtypeStruct((n_tiles, 2, OCP), jnp.float32)),
        grid=(n_tiles,),
        in_specs=[
            pl.BlockSpec((TM, KP), lambda i: (i, 0)),      # patches tile
            _resident_spec((KP, OCP)),                     # weight (resident)
            _resident_spec((1, OCP)),                      # conv bias
        ],
        out_specs=(pl.BlockSpec((TM, OCP), lambda i: (i, 0)),
                   pl.BlockSpec((1, 2, OCP), lambda i: (i, 0, 0))),
        compiler_params=cparams,
    )(patches, w2, b_p)

    # --- finalize (OCP-length vectors): fold BN into a single scale/shift ---
    sums = jnp.sum(stats[:, 0, :], axis=0)
    sqsums = jnp.sum(stats[:, 1, :], axis=0)
    relu_b = jnp.maximum(b_p[0], 0.0)                  # padded rows' y value
    pad_rows = float(MP - M)
    sums = sums - pad_rows * relu_b
    sqsums = sqsums - pad_rows * relu_b * relu_b
    mean = sums / M
    var = jnp.maximum(sqsums / M - mean * mean, 0.0)   # biased (train) variance
    inv = lax.rsqrt(var + EPS)
    scale = (gamma_p * inv).reshape(1, OCP)
    shift = (beta_p - mean * gamma_p * inv).reshape(1, OCP)

    # --- pass 2: affine-only sweep (no matmul recompute) ---
    out_flat = pl.pallas_call(
        _affine_kernel,
        out_shape=jax.ShapeDtypeStruct((MP, OCP), out_dtype),
        grid=(n_tiles,),
        in_specs=[
            pl.BlockSpec((TM, OCP), lambda i: (i, 0)),
            _resident_spec((1, OCP)),
            _resident_spec((1, OCP)),
        ],
        out_specs=pl.BlockSpec((TM, OCP), lambda i: (i, 0)),
        compiler_params=cparams,
    )(y_flat, scale, shift)

    # glue: strip padding, back to NCHW to match the nn.Module contract.
    # TODO(synk): keep NHWC downstream (or emit bf16) to drop this extra
    # read+write pass over the output.
    out = out_flat[:M, :OC].reshape(N, OH, OW, OC).transpose(0, 3, 1, 2)
    return out


if __name__ == "__main__":
    key = jax.random.PRNGKey(0)
    k1, k2, k3, k4, k5 = jax.random.split(key, 5)

    N, C, H, W = 2, 4, 16, 16
    OC, KH, KW, stride = 8, 3, 3, 1
    OH, OW = H - KH + 1, W - KW + 1

    x = jax.random.normal(k1, (N, C, H, W), jnp.float32)

    # Deterministic parameter init (Conv2d-style uniform bounds; BN affine
    # perturbed from its 1/0 default so the affine path is exercised).
    fan_in = C * KH * KW
    bound = 1.0 / (fan_in ** 0.5)
    w = jax.random.uniform(k2, (OC, C, KH, KW), jnp.float32, -bound, bound)
    b = jax.random.uniform(k3, (OC,), jnp.float32, -bound, bound)
    gamma = 1.0 + 0.1 * jax.random.normal(k4, (OC,), jnp.float32)
    beta = 0.1 * jax.random.normal(k5, (OC,), jnp.float32)

    # Pure-JAX reference (conv -> relu -> train-mode batchnorm).  The kernel
    # feeds the MXU bf16 operands (numerics contract), so the reference uses
    # the same bf16-quantized conv inputs with f32 accumulation.
    xq = x.astype(jnp.bfloat16).astype(jnp.float32)
    wq = w.astype(jnp.bfloat16).astype(jnp.float32)
    y = lax.conv_general_dilated(
        xq, wq, (stride, stride), 'VALID',
        dimension_numbers=('NCHW', 'OIHW', 'NCHW'),
        precision=lax.Precision.HIGHEST) + b.reshape(1, OC, 1, 1)
    y = jnp.maximum(y, 0.0)
    mean = y.mean(axis=(0, 2, 3), keepdims=True)
    var = ((y - mean) ** 2).mean(axis=(0, 2, 3), keepdims=True)
    inv = 1.0 / jnp.sqrt(var + EPS)
    sc = gamma.reshape(1, OC, 1, 1) * inv
    sh = beta.reshape(1, OC, 1, 1) - mean * sc

    # 1) Exact-intermediate path (f32 activation slab): tight tolerance.
    #    tm=128 exercises the multi-tile path + cross-tile stats reduction.
    out_f32 = conv_block(x, w, b, gamma, beta, stride, tm=128,
                         y_dtype=jnp.float32)
    out_f32 = jax.block_until_ready(out_f32)
    ref_f32 = sc * y + sh
    assert out_f32.shape == (N, OC, OH, OW)
    err1 = float(jnp.max(jnp.abs(out_f32 - ref_f32)))
    assert jnp.allclose(out_f32, ref_f32, atol=2e-3, rtol=2e-3), err1

    # 2) Default bf16 activation slab (halves intermediate HBM traffic): the
    #    reference models the same quantization of the stored activations
    #    (stats from f32 y, affine applied to bf16(y)).  Looser bound covers
    #    rare accumulation-order-dependent bf16 rounding flips.
    out_bf16 = conv_block(x, w, b, gamma, beta, stride, tm=128)
    out_bf16 = jax.block_until_ready(out_bf16)
    yq = y.astype(jnp.bfloat16).astype(jnp.float32)
    ref_bf16 = sc * yq + sh
    assert out_bf16.shape == (N, OC, OH, OW)
    err2 = float(jnp.max(jnp.abs(out_bf16 - ref_bf16)))
    assert err2 < 6e-2, err2

    print("KERNEL_OK")
</pallas_src>

<mosaic_0001>
module attributes {stable_mosaic.version = 11 : i64} {
  func.func @_conv_relu_stats_kernel(%arg0: i32, %arg1: memref<128x128xbf16, #tpu.memory_space<vmem>>, %arg2: memref<128x128xbf16, #tpu.memory_space<vmem>>, %arg3: memref<1x128xf32, #tpu.memory_space<vmem>>, %arg4: memref<128x128xf32, #tpu.memory_space<vmem>>, %arg5: memref<1x2x128xf32, #tpu.memory_space<vmem>>) attributes {dimension_semantics = [#tpu.dimension_semantics<parallel>], iteration_bounds = array<i64: 4>, scalar_prefetch = 0 : i64, scratch_operands = 0 : i64, tpu.core_type = #tpu.core_type<tc>, window_params = [{transform_indices = @transform_0, window_bounds = array<i64: 128, 128>}, {pipeline_mode = #tpu.pipeline_mode<synchronous>, transform_indices = @transform_1, window_bounds = array<i64: 128, 128>}, {pipeline_mode = #tpu.pipeline_mode<synchronous>, transform_indices = @transform_2, window_bounds = array<i64: 1, 128>}, {transform_indices = @transform_3, window_bounds = array<i64: 128, 128>}, {transform_indices = @transform_4, window_bounds = array<i64: 1, 2, 128>}]} {
    %c0 = arith.constant 0 : index
    %c0_0 = arith.constant 0 : index
    %0 = vector.load %arg1[%c0, %c0_0] : memref<128x128xbf16, #tpu.memory_space<vmem>>, vector<128x128xbf16>
    %c0_1 = arith.constant 0 : index
    %c0_2 = arith.constant 0 : index
    %1 = vector.load %arg2[%c0_1, %c0_2] : memref<128x128xbf16, #tpu.memory_space<vmem>>, vector<128x128xbf16>
    %cst = arith.constant dense<0.000000e+00> : vector<128x128xf32>
    %2 = tpu.matmul %0, %1, %cst {dimension_numbers = #tpu.dot_dimension_numbers<[1], [0], [0], [1], [0, 0, 1, 1], [], []>} : vector<128x128xbf16>, vector<128x128xbf16>, vector<128x128xf32> -> vector<128x128xf32>
    %c0_3 = arith.constant 0 : index
    %c0_4 = arith.constant 0 : index
    %3 = vector.load %arg3[%c0_3, %c0_4] : memref<1x128xf32, #tpu.memory_space<vmem>>, vector<1x128xf32>
    %4 = vector.broadcast %3 : vector<1x128xf32> to vector<128x128xf32>
    %5 = arith.addf %2, %4 : vector<128x128xf32>
    %cst_5 = arith.constant 0.000000e+00 : f32
    %6 = vector.broadcast %cst_5 : f32 to vector<128x128xf32>
    %7 = arith.maximumf %5, %6 : vector<128x128xf32>
    %c0_6 = arith.constant 0 : index
    %c0_7 = arith.constant 0 : index
    %8 = vector.load %arg4[%c0_6, %c0_7] : memref<128x128xf32, #tpu.memory_space<vmem>>, vector<128x128xf32>
    tpu.vector_store %arg4[%c0_6, %c0_7], %7 {strides = array<i32>} : memref<128x128xf32, #tpu.memory_space<vmem>>, vector<128x128xf32>,
    %cst_8 = arith.constant dense<0.000000e+00> : vector<128xf32>
    %9 = vector.multi_reduction <add>, %7, %cst_8 [0] : vector<128x128xf32> to vector<128xf32>
    %10 = vector.shape_cast %9 : vector<128xf32> to vector<1x128xf32>
    %c0_9 = arith.constant 0 : index
    %c0_10 = arith.constant 0 : index
    %c0_11 = arith.constant 0 : index
    %11 = vector.load %arg5[%c0_9, %c0_10, %c0_11] : memref<1x2x128xf32, #tpu.memory_space<vmem>>, vector<1x1x128xf32>
    %12 = vector.shape_cast %11 : vector<1x1x128xf32> to vector<1x128xf32>
    %13 = vector.shape_cast %10 : vector<1x128xf32> to vector<1x1x128xf32>
    tpu.vector_store %arg5[%c0_9, %c0_10, %c0_11], %13 {strides = array<i32>} : memref<1x2x128xf32, #tpu.memory_space<vmem>>, vector<1x1x128xf32>,
    %14 = arith.mulf %7, %7 : vector<128x128xf32>
    %cst_12 = arith.constant dense<0.000000e+00> : vector<128xf32>
    %15 = vector.multi_reduction <add>, %14, %cst_12 [0] : vector<128x128xf32> to vector<128xf32>
    %16 = vector.shape_cast %15 : vector<128xf32> to vector<1x128xf32>
    %c0_13 = arith.constant 0 : index
    %c1 = arith.constant 1 : index
    %c0_14 = arith.constant 0 : index
    %17 = vector.load %arg5[%c0_13, %c1, %c0_14] : memref<1x2x128xf32, #tpu.memory_space<vmem>>, vector<1x1x128xf32>
    %18 = vector.shape_cast %17 : vector<1x1x128xf32> to vector<1x128xf32>
    %19 = vector.shape_cast %16 : vector<1x128xf32> to vector<1x1x128xf32>
    tpu.vector_store %arg5[%c0_13, %c1, %c0_14], %19 {strides = array<i32>} : memref<1x2x128xf32, #tpu.memory_space<vmem>>, vector<1x1x128xf32>,
    return
  }
  func.func @transform_0(%arg0: i32) -> (i32, i32) {
    %c0_i32 = arith.constant 0 : i32
    %c0_i32_0 = arith.constant 0 : i32
    return %arg0, %c0_i32 : i32, i32
  }
  func.func @transform_1(%arg0: i32) -> (i32, i32) {
    %c0_i32 = arith.constant 0 : i32
    %c0_i32_0 = arith.constant 0 : i32
    %c0_i32_1 = arith.constant 0 : i32
    return %c0_i32, %c0_i32_0 : i32, i32
  }
  func.func @transform_2(%arg0: i32) -> (i32, i32) {
    %c0_i32 = arith.constant 0 : i32
    %c0_i32_0 = arith.constant 0 : i32
    %c0_i32_1 = arith.constant 0 : i32
    return %c0_i32, %c0_i32_0 : i32, i32
  }
  func.func @transform_3(%arg0: i32) -> (i32, i32) {
    %c0_i32 = arith.constant 0 : i32
    %c0_i32_0 = arith.constant 0 : i32
    return %arg0, %c0_i32 : i32, i32
  }
  func.func @transform_4(%arg0: i32) -> (i32, i32, i32) {
    %c0_i32 = arith.constant 0 : i32
    %c0_i32_0 = arith.constant 0 : i32
    %c0_i32_1 = arith.constant 0 : i32
    return %arg0, %c0_i32, %c0_i32_0 : i32, i32, i32
  }
}

</mosaic_0001>

<llo_original>
// kernel: tpu_custom_call.1
$region0: #{tpu_custom_call.1}
  #allocation0 [shape = 'u32[]', space=smem, size = 0x4, offset = 0x4, fixed_abs, tag = 'smem constant byte address 0x4 - core index']
  #allocation1 [shape = 'u32[144,128]{1,0:T(1,128)}', space=vmem, size = 0x12000, scoped, tag = 'internal scratch']
  %s0 = inlined_call_operand.hbm [shape: bf16[512,128], index: 0, kind: input, shape index: {}]
  %s1 = inlined_call_operand.hbm [shape: bf16[128,128], index: 1, kind: input, shape index: {}]
  %s2 = inlined_call_operand.vmem [shape: f32[1,128], index: 2, kind: input, shape index: {}]
  %s3 = inlined_call_operand.hbm [shape: f32[512,128], index: 3, kind: output, shape index: {0}]
  %s4 = inlined_call_operand.hbm [shape: f32[4,2,128], index: 4, kind: output, shape index: {1}]
  %5 = xla_tuple %s3, %s4
  %s6 = sld [smem:[#allocation0]]
  $region61: #{tpu_custom_call.1} parent=0
    _
  %s8 = ssub.s32 1, %s6
  %s9 = scalar_select 0, %s8, %s6
  $region1: #{tpu_custom_call.1} parent=0
    #allocation2 [shape = 'u8[65536]{0}', space=vmem, size = 0x10000, scoped, tag = 'input window, operand 0']
    #allocation3 [shape = 's32[2]{0}', space=sflag, size = 0x8, scoped, tag = 'scoped memory for tpu_custom_call.1']
    #allocation4 [shape = 's32[2]{0}', space=sflag, size = 0x8, scoped, tag = 'scoped memory for tpu_custom_call.1']
    #allocation5 [shape = 'u8[32768]{0}', space=vmem, size = 0x8000, scoped, tag = 'input window, operand 1, single buffered']
    #allocation6 [shape = 's32[1]{0}', space=sflag, size = 0x4, scoped, tag = 'scoped memory for tpu_custom_call.1']
    #allocation7 [shape = 'u8[131072]{0}', space=vmem, size = 0x20000, scoped, tag = 'output window, operand 0']
    #allocation8 [shape = 'u8[2048]{0}', space=vmem, size = 0x800, scoped, tag = 'output window, operand 1']
    #allocation9 [shape = 's32[2]{0}', space=sflag, size = 0x8, scoped, tag = 'scoped memory for tpu_custom_call.1']
    %10 = vsyncpa [#allocation3], 0
    %s11 = scalar_lea.sflag [#allocation3], 1
    %12 = vsyncpa %s11, 0
    %13 = vsyncpa [#allocation6], 0
    %14 = vsyncpa [#allocation4], 0
    %s15 = scalar_lea.sflag [#allocation4], 1
    %16 = vsyncpa %s15, 0
    %17 = vsyncpa [#allocation9], 0
    %s18 = scalar_lea.sflag [#allocation9], 1
    %19 = vsyncpa %s18, 0
    loop: start=0, step=1, limit=6
    $region2: #{tpu_custom_call.1} parent=1 // loop_pre_header
      _
    $region3: #{tpu_custom_call.1} parent=1 // loop_header
      %s21 = sphi 0, %s25
      %p22 = scmp.ge.s32.totalorder %s21, 6
      %s31 = sphi 0, %s33
      %s34 = sphi 0, %s31
      %s35 = sphi 0, %s34
      %s51 = sphi 0, %s35
      %s55 = sphi 0, %s55
      %s57 = sphi 0, %s55
      %s58 = sphi 0, %s57
      %s72 = sphi 0, %s58
      %s76 = sphi 0, %s76
      %s78 = sphi 0, %s76
      %s79 = sphi 0, %s78
      %s93 = sphi 0, %s79
      %s99 = sphi 0, %s101
      %s102 = sphi 0, %s99
      %s103 = sphi 0, %s102
      %s119 = sphi 0, %s103
      %s125 = sphi 0, %s127
      %s128 = sphi 0, %s125
      %s129 = sphi 0, %s128
      %s145 = sphi 0, %s129
    $region4: #{tpu_custom_call.1} parent=1 // loop_header_branch
      %24 = sbr.rel (%p22) target = $region8
    $region5: #{tpu_custom_call.1} parent=1 // loop_body
      %s26 = ssub.s32 %s21, 1
      %s27 = ssub.s32 %s21, 2
      %s28 = sadd.s32 %s21, 1
      %s29 = ssub.s32 %s21, %s28
      %p30 = scmp.eq.s32.totalorder %s29, 0
      %s32 = sadd.s32 %s31, 1
      %s33 = scalar_select %p30, %s31, %s32
      %p36 = pneg %p30
      %p37 = scmp.eq.s32.totalorder %s21, 3
      %p38 = por %p36, %p37
      %p39 = scmp.ne.s32.totalorder %s31, %s34
      %p40 = scmp.eq.s32.totalorder %s21, 0
      %p41 = por %p39, %p40
      %p42 = scmp.ne.s32.totalorder %s31, %s34
      %p43 = scmp.eq.s32.totalorder %s26, 3
      %p44 = por %p42, %p43
      %p45 = scmp.ne.s32.totalorder %s34, %s35
      %p46 = scmp.eq.s32.totalorder %s26, 0
      %p47 = por %p45, %p46
      %p48 = scmp.ne.s32.totalorder %s34, %s35
      %p49 = scmp.eq.s32.totalorder %s27, 3
      %p50 = por %p48, %p49
      %p52 = scmp.ne.s32.totalorder %s35, %s51
      %p53 = scmp.eq.s32.totalorder %s27, 0
      %p54 = por %p52, %p53
      %s56 = sadd.s32 %s55, 1
      %p59 = scmp.eq.s32.totalorder %s21, 3
      %p60 = scmp.ne.s32.totalorder %s55, %s57
      %p61 = scmp.eq.s32.totalorder %s21, 0
      %p62 = por %p60, %p61
      %p63 = scmp.ne.s32.totalorder %s55, %s57
      %p64 = scmp.eq.s32.totalorder %s26, 3
      %p65 = por %p63, %p64
      %p66 = scmp.ne.s32.totalorder %s57, %s58
      %p67 = scmp.eq.s32.totalorder %s26, 0
      %p68 = por %p66, %p67
      %p69 = scmp.ne.s32.totalorder %s57, %s58
      %p70 = scmp.eq.s32.totalorder %s27, 3
      %p71 = por %p69, %p70
      %p73 = scmp.ne.s32.totalorder %s58, %s72
      %p74 = scmp.eq.s32.totalorder %s27, 0
      %p75 = por %p73, %p74
      %s77 = sadd.s32 %s76, 1
      %p80 = scmp.eq.s32.totalorder %s21, 3
      %p81 = scmp.ne.s32.totalorder %s76, %s78
      %p82 = scmp.eq.s32.totalorder %s21, 0
      %p83 = por %p81, %p82
      %p84 = scmp.ne.s32.totalorder %s76, %s78
      %p85 = scmp.eq.s32.totalorder %s26, 3
      %p86 = por %p84, %p85
      %p87 = scmp.ne.s32.totalorder %s78, %s79
      %p88 = scmp.eq.s32.totalorder %s26, 0
      %p89 = por %p87, %p88
      %p90 = scmp.ne.s32.totalorder %s78, %s79
      %p91 = scmp.eq.s32.totalorder %s27, 3
      %p92 = por %p90, %p91
      %p94 = scmp.ne.s32.totalorder %s79, %s93
      %p95 = scmp.eq.s32.totalorder %s27, 0
      %p96 = por %p94, %p95
      %s97 = ssub.s32 %s21, %s28
      %p98 = scmp.eq.s32.totalorder %s97, 0
      %s100 = sadd.s32 %s99, 1
      %s101 = scalar_select %p98, %s99, %s100
      %p104 = pneg %p98
      %p105 = scmp.eq.s32.totalorder %s21, 3
      %p106 = por %p104, %p105
      %p107 = scmp.ne.s32.totalorder %s99, %s102
      %p108 = scmp.eq.s32.totalorder %s21, 0
      %p109 = por %p107, %p108
      %p110 = scmp.ne.s32.totalorder %s99, %s102
      %p111 = scmp.eq.s32.totalorder %s26, 3
      %p112 = por %p110, %p111
      %p113 = scmp.ne.s32.totalorder %s102, %s103
      %p114 = scmp.eq.s32.totalorder %s26, 0
      %p115 = por %p113, %p114
      %p116 = scmp.ne.s32.totalorder %s102, %s103
      %p117 = scmp.eq.s32.totalorder %s27, 3
      %p118 = por %p116, %p117
      %p120 = scmp.ne.s32.totalorder %s103, %s119
      %p121 = scmp.eq.s32.totalorder %s27, 0
      %p122 = por %p120, %p121
      %s123 = ssub.s32 %s21, %s28
      %p124 = scmp.eq.s32.totalorder %s123, 0
      %s126 = sadd.s32 %s125, 1
      %s127 = scalar_select %p124, %s125, %s126
      %p130 = pneg %p124
      %p131 = scmp.eq.s32.totalorder %s21, 3
      %p132 = por %p130, %p131
      %p133 = scmp.ne.s32.totalorder %s125, %s128
      %p134 = scmp.eq.s32.totalorder %s21, 0
      %p135 = por %p133, %p134
      %p136 = scmp.ne.s32.totalorder %s125, %s128
      %p137 = scmp.eq.s32.totalorder %s26, 3
      %p138 = por %p136, %p137
      %p139 = scmp.ne.s32.totalorder %s128, %s129
      %p140 = scmp.eq.s32.totalorder %s26, 0
      %p141 = por %p139, %p140
      %p142 = scmp.ne.s32.totalorder %s128, %s129
      %p143 = scmp.eq.s32.totalorder %s27, 3
      %p144 = por %p142, %p143
      %p146 = scmp.ne.s32.totalorder %s129, %s145
      %p147 = scmp.eq.s32.totalorder %s27, 0
      %p148 = por %p146, %p147
      %p149 = scmp.le.s32.totalorder 1, %s21
      %p150 = scmp.lt.s32.totalorder %s21, 5
      %p151 = pnand %p149, %p150
      %p152 = pneg %p151
      // Predicated region
      $region9: #{tpu_custom_call.1} parent=5 // pred_check
        _
      $region10: #{tpu_custom_call.1} parent=5 // pred_check_branch
        %154 = sbr.rel (%p151) target = $region12
      $region11: #{tpu_custom_call.1} parent=5 // pred_region
        %s155 = ssub.s32 %s21, 1
        // Predicated region
        $region13: #{tpu_custom_call.1} parent=11 // pred_check
          %p156 = pneg %p68
        $region14: #{tpu_custom_call.1} parent=11 // pred_check_branch
          %158 = sbr.rel (%p156) target = $region16
        $region15: #{tpu_custom_call.1} parent=11 // pred_region
          %s160 = ssub.s32 1024, 1024
          %161 = vsyncadd [#allocation6], %s160
          %s162 = sshll.u32 [#allocation5], 4
          %s163 = int_to_ptr.vmem [resolvable:$true] %s162
          %168 = dma.hbm_to_vmem [thread:$0]  %s1, 1024, %s163, [#allocation6], 64, 64, 4
        $region16: #{tpu_custom_call.1} parent=11 // pred_fallthru
          _
        // Predicated region
        $region17: #{tpu_custom_call.1} parent=11 // pred_check
          %p169 = pneg %p89
        $region18: #{tpu_custom_call.1} parent=11 // pred_check_branch
          %171 = sbr.rel (%p169) target = $region20
        $region19: #{tpu_custom_call.1} parent=11 // pred_region
          _
        $region20: #{tpu_custom_call.1} parent=11 // pred_fallthru
          _
      $region12: #{tpu_custom_call.1} parent=5 // pred_fallthru
        _
      %p172 = scmp.lt.s32.totalorder %s21, 4
      // Predicated region
      $region21: #{tpu_custom_call.1} parent=5 // pred_check
        %p173 = pneg %p172
      $region22: #{tpu_custom_call.1} parent=5 // pred_check_branch
        %175 = sbr.rel (%p173) target = $region24
      $region23: #{tpu_custom_call.1} parent=5 // pred_region
        // Predicated region
        $region25: #{tpu_custom_call.1} parent=23 // pred_check
          %p176 = pneg %p41
        $region26: #{tpu_custom_call.1} parent=23 // pred_check_branch
          %178 = sbr.rel (%p176) target = $region28
        $region27: #{tpu_custom_call.1} parent=23 // pred_region
          %s179 = sand.u32 %s31, 1
          %s180 = scalar_lea.sflag [#allocation3], %s179
          %s181 = sand.u32 %s31, 1
          %s182 = smul.addr %s181, 64
          %s183 = scalar_lea.vmem [#allocation2], %s182
          %s184 = smul.u32 16, %s21
          %s186 = ssub.s32 1024, 1024
          %187 = vsyncadd %s180, %s186
          %s188 = smul.addr %s184, 64
          %s189 = scalar_lea.hbm %s0, %s188
          %s190 = sshll.u32 %s183, 4
          %s191 = int_to_ptr.vmem [resolvable:$true] %s190
          %196 = dma.hbm_to_vmem [thread:$0]  %s189, 1024, %s191, %s180, 64, 64, 4
        $region28: #{tpu_custom_call.1} parent=23 // pred_fallthru
          _
      $region24: #{tpu_custom_call.1} parent=5 // pred_fallthru
        _
      %p197 = scmp.le.s32.totalorder 1, %s21
      %p198 = scmp.lt.s32.totalorder %s21, 5
      %p199 = pnand %p197, %p198
      %p200 = pneg %p199
      // Predicated region
      $region29: #{tpu_custom_call.1} parent=5 // pred_check
        _
      $region30: #{tpu_custom_call.1} parent=5 // pred_check_branch
        %202 = sbr.rel (%p199) target = $region32
      $region31: #{tpu_custom_call.1} parent=5 // pred_region
        %s203 = ssub.s32 %s21, 1
        %s204 = sand.u32 %s34, 1
        %s205 = scalar_lea.sflag [#allocation3], %s204
        %s206 = sand.u32 %s34, 1
        %s207 = smul.addr %s206, 64
        %s208 = scalar_lea.vmem [#allocation2], %s207
        // Predicated region
        $region33: #{tpu_custom_call.1} parent=31 // pred_check
          %p209 = pneg %p47
        $region34: #{tpu_custom_call.1} parent=31 // pred_check_branch
          %211 = sbr.rel (%p209) target = $region36
        $region35: #{tpu_custom_call.1} parent=31 // pred_region
          %212 = dma.done %s205, 1024
        $region36: #{tpu_custom_call.1} parent=31 // pred_fallthru
          _
        // Predicated region
        $region37: #{tpu_custom_call.1} parent=31 // pred_check
          %p213 = pneg %p68
        $region38: #{tpu_custom_call.1} parent=31 // pred_check_branch
          %215 = sbr.rel (%p213) target = $region40
        $region39: #{tpu_custom_call.1} parent=31 // pred_region
          %216 = dma.done [#allocation6], 1024
        $region40: #{tpu_custom_call.1} parent=31 // pred_fallthru
          _
        %s217 = sand.u32 %s34, 1
        %s218 = scalar_lea.sflag [#allocation3], %s217
        %s219 = sand.u32 %s34, 1
        %s220 = smul.addr %s219, 64
        %s221 = scalar_lea.vmem [#allocation2], %s220
        %p222 = pneg %p47
        %p223 = pneg %p44
        %p224 = pneg %p68
        %p225 = pneg %p65
        %p226 = pneg %p89
        %p227 = pneg %p86
        %p228 = pneg %p115
        %p229 = pneg %p112
        %s230 = sand.u32 %s102, 1
        %s231 = scalar_lea.sflag [#allocation4], %s230
        %s232 = sand.u32 %s102, 1
        %s233 = smul.addr %s232, 128
        %s234 = scalar_lea.vmem [#allocation7], %s233
        %p235 = pneg %p141
        %p236 = pneg %p138
        %s237 = sand.u32 %s128, 1
        %s238 = scalar_lea.sflag [#allocation9], %s237
        %s239 = sand.u32 %s128, 1
        %s240 = smul.addr %s239, 2
        %s241 = scalar_lea.vmem [#allocation8], %s240
        %s242 = smul.u32 16, %s26
        %s243 = smul.u32 16, %s26
        %v245 = vld [vmem:[%s208] sm:$0xf]
        %v246 = vld [vmem:[%s208 + $0x4] sm:$0xf]
        %v247 = vld [vmem:[%s208 + $0x8] sm:$0xf]
        %v248 = vld [vmem:[%s208 + $0xc] sm:$0xf]
        %v249 = vld [vmem:[%s208 + $0x10] sm:$0xf]
        %v250 = vld [vmem:[%s208 + $0x14] sm:$0xf]
        %v251 = vld [vmem:[%s208 + $0x18] sm:$0xf]
        %v252 = vld [vmem:[%s208 + $0x1c] sm:$0xf]
        %v253 = vld [vmem:[%s208 + $0x20] sm:$0xf]
        %v254 = vld [vmem:[%s208 + $0x24] sm:$0xf]
        %v255 = vld [vmem:[%s208 + $0x28] sm:$0xf]
        %v256 = vld [vmem:[%s208 + $0x2c] sm:$0xf]
        %v257 = vld [vmem:[%s208 + $0x30] sm:$0xf]
        %v258 = vld [vmem:[%s208 + $0x34] sm:$0xf]
        %v259 = vld [vmem:[%s208 + $0x38] sm:$0xf]
        %v260 = vld [vmem:[%s208 + $0x3c] sm:$0xf]
        %v261 = vld [vmem:[#allocation5] sm:$0xf]
        %v262 = vld [vmem:[#allocation5 + $0x4] sm:$0xf]
        %v263 = vld [vmem:[#allocation5 + $0x8] sm:$0xf]
        %v264 = vld [vmem:[#allocation5 + $0xc] sm:$0xf]
        %v265 = vld [vmem:[#allocation5 + $0x10] sm:$0xf]
        %v266 = vld [vmem:[#allocation5 + $0x14] sm:$0xf]
        %v267 = vld [vmem:[#allocation5 + $0x18] sm:$0xf]
        %v268 = vld [vmem:[#allocation5 + $0x1c] sm:$0xf]
        %v269 = vld [vmem:[#allocation5 + $0x20] sm:$0xf]
        %v270 = vld [vmem:[#allocation5 + $0x24] sm:$0xf]
        %v271 = vld [vmem:[#allocation5 + $0x28] sm:$0xf]
        %v272 = vld [vmem:[#allocation5 + $0x2c] sm:$0xf]
        %v273 = vld [vmem:[#allocation5 + $0x30] sm:$0xf]
        %v274 = vld [vmem:[#allocation5 + $0x34] sm:$0xf]
        %v275 = vld [vmem:[#allocation5 + $0x38] sm:$0xf]
        %v276 = vld [vmem:[#allocation5 + $0x3c] sm:$0xf]
        %v277 = vld [vmem:[%s2] sm:$0x1]
        %v279 = vlaneseq
        %v280 = vshrl.u32 %v279, 7
        %v281 = vsub.s32 0, %v280
        %v282 = vrot.slane %v277, %v281
        %v300 = vunpack.c.l.b16 %v245
        %v301 = vunpack.c.l.b16 %v246
        %v302 = vunpack.c.l.b16 %v247
        %v303 = vunpack.c.l.b16 %v248
        %v304 = vunpack.c.l.b16 %v249
        %v305 = vunpack.c.l.b16 %v250
        %v306 = vunpack.c.l.b16 %v251
        %v307 = vunpack.c.l.b16 %v252
        %v308 = vunpack.c.l.b16 %v253
        %v309 = vunpack.c.l.b16 %v254
        %v310 = vunpack.c.l.b16 %v255
        %v311 = vunpack.c.l.b16 %v256
        %v312 = vunpack.c.l.b16 %v257
        %v313 = vunpack.c.l.b16 %v258
        %v314 = vunpack.c.l.b16 %v259
        %v315 = vunpack.c.l.b16 %v260
        %v316 = vpack.c.b16 %v301, %v300
        %v317 = vpack.c.b16 %v303, %v302
        %v318 = vpack.c.b16 %v305, %v304
        %v319 = vpack.c.b16 %v307, %v306
        %v320 = vpack.c.b16 %v309, %v308
        %v321 = vpack.c.b16 %v311, %v310
        %v322 = vpack.c.b16 %v313, %v312
        %v323 = vpack.c.b16 %v315, %v314
        %v348 = vunpack.c.l.b16 %v261
        %v349 = vunpack.c.l.b16 %v262
        %v350 = vunpack.c.l.b16 %v263
        %v351 = vunpack.c.l.b16 %v264
        %v352 = vunpack.c.l.b16 %v265
        %v353 = vunpack.c.l.b16 %v266
        %v354 = vunpack.c.l.b16 %v267
        %v355 = vunpack.c.l.b16 %v268
        %v356 = vunpack.c.l.b16 %v269
        %v357 = vunpack.c.l.b16 %v270
        %v358 = vunpack.c.l.b16 %v271
        %v359 = vunpack.c.l.b16 %v272
        %v360 = vunpack.c.l.b16 %v273
        %v361 = vunpack.c.l.b16 %v274
        %v362 = vunpack.c.l.b16 %v275
        %v363 = vunpack.c.l.b16 %v276
        %v364 = vpack.c.b16 %v349, %v348
        %v365 = vpack.c.b16 %v351, %v350
        %v366 = vpack.c.b16 %v353, %v352
        %v367 = vpack.c.b16 %v355, %v354
        %v368 = vpack.c.b16 %v357, %v356
        %v369 = vpack.c.b16 %v359, %v358
        %v370 = vpack.c.b16 %v361, %v360
        %v371 = vpack.c.b16 %v363, %v362
        %380 = vmatprep.subr.bf16.mxu0 0
        %381 = vmatpush1.bf16.msra.mxu0 %v364
        %382 = vmatprep.subr.bf16.mxu0 0
        %383 = vmatpush1.bf16.msra.mxu0 %v365
        %384 = vmatprep.subr.bf16.mxu0 0
        %385 = vmatpush1.bf16.msra.mxu0 %v366
        %386 = vmatprep.subr.bf16.mxu0 0
        %387 = vmatpush1.bf16.msra.mxu0 %v367
        %388 = vmatprep.subr.bf16.mxu0 0
        %389 = vmatpush1.bf16.msra.mxu0 %v368
        %390 = vmatprep.subr.bf16.mxu0 0
        %391 = vmatpush1.bf16.msra.mxu0 %v369
        %392 = vmatprep.subr.bf16.mxu0 0
        %393 = vmatpush1.bf16.msra.mxu0 %v370
        %394 = vmatprep.subr.bf16.mxu0 0
        %395 = vmatpush1.bf16.msra.mxu0 %v371
        %396 = vmatprep.subr.bf16.mxu0 0
        %397 = vmatpush1.bf16.msra.mxu0 0
        %398 = vmatprep.subr.bf16.mxu0 0
        %399 = vmatpush1.bf16.msra.mxu0 0
        %400 = vmatprep.subr.bf16.mxu0 0
        %401 = vmatpush1.bf16.msra.mxu0 0
        %402 = vmatprep.subr.bf16.mxu0 0
        %403 = vmatpush1.bf16.msra.mxu0 0
        %404 = vmatprep.subr.bf16.mxu0 0
        %405 = vmatpush1.bf16.msra.mxu0 0
        %406 = vmatprep.subr.bf16.mxu0 0
        %407 = vmatpush1.bf16.msra.mxu0 0
        %408 = vmatprep.subr.bf16.mxu0 0
        %409 = vmatpush1.bf16.msra.mxu0 0
        %410 = vmatprep.subr.bf16.mxu0 0
        %411 = vmatpush1.bf16.msra.mxu0 0
        %412 = vmatprep.mubr.bf16.mxu0 0
        %413 = vmatmul.mubr.bf16.gmra.mrb[0].mxu0 %v316
        %v414 = vpop.f32.mrb[0].mxu0
        %v415 = vadd.f32 %v282, %v414
        %v416 = vpop.f32.mrb[0].mxu0
        %v417 = vpop.f32.mrb[0].mxu0
        %v418 = vadd.f32 %v282, %v417
        %v419 = vpop.f32.mrb[0].mxu0
        %420 = vmatprep.mubr.bf16.mxu0 0
        %421 = vmatmul.mubr.bf16.gmra.mrb[0].mxu0 %v317
        %v422 = vpop.f32.mrb[0].mxu0
        %v423 = vadd.f32 %v282, %v422
        %v424 = vpop.f32.mrb[0].mxu0
        %v425 = vpop.f32.mrb[0].mxu0
        %v426 = vadd.f32 %v282, %v425
        %v427 = vpop.f32.mrb[0].mxu0
        %428 = vmatprep.mubr.bf16.mxu0 0
        %429 = vmatmul.mubr.bf16.gmra.mrb[0].mxu0 %v318
        %v430 = vpop.f32.mrb[0].mxu0
        %v431 = vadd.f32 %v282, %v430
        %v432 = vpop.f32.mrb[0].mxu0
        %v433 = vpop.f32.mrb[0].mxu0
        %v434 = vadd.f32 %v282, %v433
        %v435 = vpop.f32.mrb[0].mxu0
        %436 = vmatprep.mubr.bf16.mxu0 0
        %437 = vmatmul.mubr.bf16.gmra.mrb[0].mxu0 %v319
        %v438 = vpop.f32.mrb[0].mxu0
        %v439 = vadd.f32 %v282, %v438
        %v440 = vpop.f32.mrb[0].mxu0
        %v441 = vpop.f32.mrb[0].mxu0
        %v442 = vadd.f32 %v282, %v441
        %v443 = vpop.f32.mrb[0].mxu0
        %444 = vmatprep.mubr.bf16.mxu0 0
        %445 = vmatmul.mubr.bf16.gmra.mrb[0].mxu0 %v320
        %v446 = vpop.f32.mrb[0].mxu0
        %v447 = vadd.f32 %v282, %v446
        %v448 = vpop.f32.mrb[0].mxu0
        %v449 = vpop.f32.mrb[0].mxu0
        %v450 = vadd.f32 %v282, %v449
        %v451 = vpop.f32.mrb[0].mxu0
        %452 = vmatprep.mubr.bf16.mxu0 0
        %453 = vmatmul.mubr.bf16.gmra.mrb[0].mxu0 %v321
        %v454 = vpop.f32.mrb[0].mxu0
        %v455 = vadd.f32 %v282, %v454
        %v456 = vpop.f32.mrb[0].mxu0
        %v457 = vpop.f32.mrb[0].mxu0
        %v458 = vadd.f32 %v282, %v457
        %v459 = vpop.f32.mrb[0].mxu0
        %460 = vmatprep.mubr.bf16.mxu0 0
        %461 = vmatmul.mubr.bf16.gmra.mrb[0].mxu0 %v322
        %v462 = vpop.f32.mrb[0].mxu0
        %v463 = vadd.f32 %v282, %v462
        %v464 = vpop.f32.mrb[0].mxu0
        %v465 = vpop.f32.mrb[0].mxu0
        %v466 = vadd.f32 %v282, %v465
        %v467 = vpop.f32.mrb[0].mxu0
        %468 = vmatprep.mubr.bf16.mxu0 0
        %469 = vmatmul.mubr.bf16.gmra.mrb[0].mxu0 %v323
        %v470 = vpop.f32.mrb[0].mxu0
        %v471 = vadd.f32 %v282, %v470
        %v472 = vpop.f32.mrb[0].mxu0
        %v473 = vpop.f32.mrb[0].mxu0
        %v474 = vadd.f32 %v282, %v473
        %v475 = vpop.f32.mrb[0].mxu0
        %476 = vdwg.mxu0
        %v477 = vmax.f32 %v415, 0.0
        %v478 = vmax.f32 %v418, 0.0
        %v479 = vmax.f32 %v423, 0.0
        %v480 = vmax.f32 %v426, 0.0
        %v481 = vmax.f32 %v431, 0.0
        %v482 = vmax.f32 %v434, 0.0
        %v483 = vmax.f32 %v439, 0.0
        %v484 = vmax.f32 %v442, 0.0
        %v485 = vmax.f32 %v447, 0.0
        %v486 = vmax.f32 %v450, 0.0
        %v487 = vmax.f32 %v455, 0.0
        %v488 = vmax.f32 %v458, 0.0
        %v489 = vmax.f32 %v463, 0.0
        %v490 = vmax.f32 %v466, 0.0
        %v491 = vmax.f32 %v471, 0.0
        %v492 = vmax.f32 %v474, 0.0
        %493 = vst [vmem:[%s234] sm:$0xff] %v477
        %494 = vst [vmem:[%s234 + $0x8] sm:$0xff] %v478
        %495 = vst [vmem:[%s234 + $0x10] sm:$0xff] %v479
        %496 = vst [vmem:[%s234 + $0x18] sm:$0xff] %v480
        %497 = vst [vmem:[%s234 + $0x20] sm:$0xff] %v481
        %498 = vst [vmem:[%s234 + $0x28] sm:$0xff] %v482
        %499 = vst [vmem:[%s234 + $0x30] sm:$0xff] %v483
        %500 = vst [vmem:[%s234 + $0x38] sm:$0xff] %v484
        %501 = vst [vmem:[%s234 + $0x40] sm:$0xff] %v485
        %502 = vst [vmem:[%s234 + $0x48] sm:$0xff] %v486
        %503 = vst [vmem:[%s234 + $0x50] sm:$0xff] %v487
        %504 = vst [vmem:[%s234 + $0x58] sm:$0xff] %v488
        %505 = vst [vmem:[%s234 + $0x60] sm:$0xff] %v489
        %506 = vst [vmem:[%s234 + $0x68] sm:$0xff] %v490
        %507 = vst [vmem:[%s234 + $0x70] sm:$0xff] %v491
        %508 = vst [vmem:[%s234 + $0x78] sm:$0xff] %v492
        %v509 = vadd.f32 %v477, %v478
        %v510 = vadd.f32 %v509, %v479
        %v511 = vadd.f32 %v510, %v480
        %v512 = vadd.f32 %v511, %v481
        %v513 = vadd.f32 %v512, %v482
        %v514 = vadd.f32 %v513, %v483
        %v515 = vadd.f32 %v514, %v484
        %v516 = vadd.f32 %v515, %v485
        %v517 = vadd.f32 %v516, %v486
        %v518 = vadd.f32 %v517, %v487
        %v519 = vadd.f32 %v518, %v488
        %v520 = vadd.f32 %v519, %v489
        %v521 = vadd.f32 %v520, %v490
        %v522 = vadd.f32 %v521, %v491
        %v523 = vadd.f32 %v522, %v492
        %v524 = vrot.slane %v523, 4
        %v525 = vadd.f32 %v523, %v524
        %v526 = vrot.slane %v525, 2
        %v527 = vadd.f32 %v525, %v526
        %v528 = vrot.slane %v527, 1
        %v529 = vadd.f32 %v527, %v528
        %530 = vst [vmem:[%s241] sm:$0x1] %v529
        %v531 = vmul.f32 %v477, %v477
        %v532 = vmul.f32 %v478, %v478
        %v533 = vmul.f32 %v479, %v479
        %v534 = vmul.f32 %v480, %v480
        %v535 = vmul.f32 %v481, %v481
        %v536 = vmul.f32 %v482, %v482
        %v537 = vmul.f32 %v483, %v483
        %v538 = vmul.f32 %v484, %v484
        %v539 = vmul.f32 %v485, %v485
        %v540 = vmul.f32 %v486, %v486
        %v541 = vmul.f32 %v487, %v487
        %v542 = vmul.f32 %v488, %v488
        %v543 = vmul.f32 %v489, %v489
        %v544 = vmul.f32 %v490, %v490
        %v545 = vmul.f32 %v491, %v491
        %v546 = vmul.f32 %v492, %v492
        %v547 = vadd.f32 %v531, %v532
        %v548 = vadd.f32 %v547, %v533
        %v549 = vadd.f32 %v548, %v534
        %v550 = vadd.f32 %v549, %v535
        %v551 = vadd.f32 %v550, %v536
        %v552 = vadd.f32 %v551, %v537
        %v553 = vadd.f32 %v552, %v538
        %v554 = vadd.f32 %v553, %v539
        %v555 = vadd.f32 %v554, %v540
        %v556 = vadd.f32 %v555, %v541
        %v557 = vadd.f32 %v556, %v542
        %v558 = vadd.f32 %v557, %v543
        %v559 = vadd.f32 %v558, %v544
        %v560 = vadd.f32 %v559, %v545
        %v561 = vadd.f32 %v560, %v546
        %v562 = vrot.slane %v561, 4
        %v563 = vadd.f32 %v561, %v562
        %v564 = vrot.slane %v563, 2
        %v565 = vadd.f32 %v563, %v564
        %v566 = vrot.slane %v565, 1
        %v567 = vadd.f32 %v565, %v566
        %568 = vst [vmem:[%s241 + $0x1] sm:$0x1] %v567
        %s569 = sand.u32 %s102, 1
        %s570 = scalar_lea.sflag [#allocation4], %s569
        %s571 = sand.u32 %s102, 1
        %s572 = smul.addr %s571, 128
        %s573 = scalar_lea.vmem [#allocation7], %s572
        %s574 = sand.u32 %s128, 1
        %s575 = scalar_lea.sflag [#allocation9], %s574
        %s576 = sand.u32 %s128, 1
        %s577 = smul.addr %s576, 2
        %s578 = scalar_lea.vmem [#allocation8], %s577
        // Predicated region
        $region41: #{tpu_custom_call.1} parent=31 // pred_check
          %p579 = pneg %p112
        $region42: #{tpu_custom_call.1} parent=31 // pred_check_branch
          %581 = sbr.rel (%p579) target = $region44
        $region43: #{tpu_custom_call.1} parent=31 // pred_region
          %s582 = smul.u32 16, %s26
          %s584 = ssub.s32 2048, 2048
          %585 = vsyncadd %s570, %s584
          %s586 = smul.addr %s582, 128
          %s587 = scalar_lea.hbm %s3, %s586
          %s588 = sshll.u32 %s573, 4
          %s589 = int_to_ptr.vmem [resolvable:$true] %s588
          %594 = dma.vmem_to_hbm [thread:$0]  %s589, 2048, %s587, %s570, 128, 128, 8
        $region44: #{tpu_custom_call.1} parent=31 // pred_fallthru
          _
        // Predicated region
        $region45: #{tpu_custom_call.1} parent=31 // pred_check
          %p595 = pneg %p138
        $region46: #{tpu_custom_call.1} parent=31 // pred_check_branch
          %597 = sbr.rel (%p595) target = $region48
        $region47: #{tpu_custom_call.1} parent=31 // pred_region
          %s599 = ssub.s32 32, 32
          %600 = vsyncadd %s575, %s599
          %s601 = smul.addr %s26, 32
          %s602 = scalar_lea.hbm %s4, %s601
          %s604 = sshll.u32 %s578, 4
          %s605 = int_to_ptr.vmem [resolvable:$true] %s604
          %607 = dma.vmem_to_hbm [thread:$0]  %s605, 32, %s602, %s575
        $region48: #{tpu_custom_call.1} parent=31 // pred_fallthru
          _
      $region32: #{tpu_custom_call.1} parent=5 // pred_fallthru
        _
      %p608 = scmp.le.s32.totalorder 2, %s21
      // Predicated region
      $region49: #{tpu_custom_call.1} parent=5 // pred_check
        %p609 = pneg %p608
      $region50: #{tpu_custom_call.1} parent=5 // pred_check_branch
        %611 = sbr.rel (%p609) target = $region52
      $region51: #{tpu_custom_call.1} parent=5 // pred_region
        %s612 = ssub.s32 %s21, 2
        // Predicated region
        $region53: #{tpu_custom_call.1} parent=51 // pred_check
          %p613 = pneg %p118
        $region54: #{tpu_custom_call.1} parent=51 // pred_check_branch
          %615 = sbr.rel (%p613) target = $region56
        $region55: #{tpu_custom_call.1} parent=51 // pred_region
          %s616 = sand.u32 %s103, 1
          %s617 = scalar_lea.sflag [#allocation4], %s616
          %s618 = sand.u32 %s103, 1
          %s619 = smul.addr %s618, 128
          %s620 = scalar_lea.vmem [#allocation7], %s619
          %621 = dma.done %s617, 2048
        $region56: #{tpu_custom_call.1} parent=51 // pred_fallthru
          _
        // Predicated region
        $region57: #{tpu_custom_call.1} parent=51 // pred_check
          %p622 = pneg %p144
        $region58: #{tpu_custom_call.1} parent=51 // pred_check_branch
          %624 = sbr.rel (%p622) target = $region60
        $region59: #{tpu_custom_call.1} parent=51 // pred_region
          %s625 = sand.u32 %s129, 1
          %s626 = scalar_lea.sflag [#allocation9], %s625
          %s627 = sand.u32 %s129, 1
          %s628 = smul.addr %s627, 2
          %s629 = scalar_lea.vmem [#allocation8], %s628
          %630 = dma.done %s626, 32
        $region60: #{tpu_custom_call.1} parent=51 // pred_fallthru
          _
      $region52: #{tpu_custom_call.1} parent=5 // pred_fallthru
        _
    $region6: #{tpu_custom_call.1} parent=1 // loop_footer
      %s25 = sadd.s32 1, %s21
    $region7: #{tpu_custom_call.1} parent=1 // loop_footer_branch
      %20 = sbr.rel target = $region3
    $region8: #{tpu_custom_call.1} parent=1 // loop_exit
      _
    %631 = vsyncpa [#allocation3], 1
    %s632 = scalar_lea.sflag [#allocation3], 1
    %633 = vsyncpa %s632, 1
    %634 = vsyncpa [#allocation6], 1
    %635 = vsyncpa [#allocation4], 1
    %s636 = scalar_lea.sflag [#allocation4], 1
    %637 = vsyncpa %s636, 1
    %638 = vsyncpa [#allocation9], 1
    %s639 = scalar_lea.sflag [#allocation9], 1
    %640 = vsyncpa %s639, 1

</llo_original>
